<compile_context>
chip_gen: v7x
topology: tpu7x:2x2x1
jax: 0.10.0
libtpu: 0.0.40
codegen_flags: <defaults>
</compile_context>

<pallas_src>
import functools

import jax
import jax.numpy as jnp
from jax.experimental import pallas as pl
from jax.experimental.pallas import tpu as pltpu


def _round_up(x, m):
    return (x + m - 1) // m * m


def _tpu_defaults():
    """Generation-dependent tiling and VMEM policy."""
    try:
        vmem_bytes = pltpu.get_tpu_info().vmem_capacity_bytes
    except Exception:
        vmem_bytes = 64 * 1024 * 1024          # conservative (v7x-sized) fallback
    if vmem_bytes <= 96 * 1024 * 1024:
        # v7x-class: 64 MiB per TensorCore, 2 TCs/chip -> keep compiler
        # headroom below physical VMEM and split the token axis across cores.
        return dict(block_tokens=512,
                    vmem_budget_bytes=40 * 1024 * 1024,
                    vmem_limit_bytes=56 * 1024 * 1024,
                    min_token_blocks=2)
    # v5e / v6e: 128 MiB VMEM, 1 TC/chip -> big tiles toward the MXU roofline.
    return dict(block_tokens=768,
                vmem_budget_bytes=90 * 1024 * 1024,
                vmem_limit_bytes=100 * 1024 * 1024,
                min_token_blocks=1)


def _vmem_est(tm, ti, H, io_bytes, w_bytes):
    weights = 2 * (H * 2 * ti + ti * H) * w_bytes       # wgu + wd, double-buffered
    io = 2 * 2 * (tm * H) * io_bytes                    # x + out, double-buffered
    acc = tm * H * 4                                    # f32 accumulator scratch
    return weights + io + acc


def prepare_shared_mlp_weights(wg_t, wu_t, wd_t, *, block_inter=512,
                               compute_dtype=None, block_tokens=None,
                               vmem_budget_bytes=None):
    """One-time weight preparation (call at weight-load time, NOT per forward).

    wg_t, wu_t : (H, I)  gate/up nn.Linear weight, transposed (in, out)
    wd_t       : (I, H)  down    nn.Linear weight, transposed (in, out)

    Returns (wgu, wd_padded, ti):
      wgu       : (H, 2*Ip)  per intermediate tile k the columns are [gate_k | up_k]
      wd_padded : (Ip, H)
      ti        : static intermediate tile size (pass to shared_qwen2_moe_mlp)
    """
    H, I = wg_t.shape
    assert wu_t.shape == (H, I) and wd_t.shape == (I, H)
    d = _tpu_defaults()
    block_tokens = d["block_tokens"] if block_tokens is None else block_tokens
    vmem_budget = (d["vmem_budget_bytes"] if vmem_budget_bytes is None
                   else vmem_budget_bytes)

    if compute_dtype is not None:
        wg_t = wg_t.astype(compute_dtype)
        wu_t = wu_t.astype(compute_dtype)
        wd_t = wd_t.astype(compute_dtype)
    w_bytes = jnp.dtype(wg_t.dtype).itemsize

    # Intermediate tile: multiple of 128 lanes, capped at block_inter, shrunk
    # until the (nominal-tm) double-buffered working set fits the VMEM budget.
    tm_nom = _round_up(max(block_tokens, 8), 8)
    ti = min(_round_up(block_inter, 128), _round_up(I, 128))
    while ti > 128 and _vmem_est(tm_nom, ti, H, w_bytes, w_bytes) > vmem_budget:
        ti -= 128

    Ip = _round_up(I, ti)
    nI = Ip // ti
    # Zero padding along I is exact: silu(0)*0 = 0 and padded wd rows are 0.
    if Ip != I:
        wg_t = jnp.pad(wg_t, ((0, 0), (0, Ip - I)))
        wu_t = jnp.pad(wu_t, ((0, 0), (0, Ip - I)))
        wd_t = jnp.pad(wd_t, ((0, Ip - I), (0, 0)))
    # Fuse gate/up: per intermediate tile k the columns are [gate_k | up_k],
    # so the kernel issues a single MXU matmul for the first GEMM pair.
    wgu = jnp.concatenate(
        [wg_t.reshape(H, nI, ti), wu_t.reshape(H, nI, ti)], axis=-1
    ).reshape(H, 2 * Ip)
    return wgu, wd_t, ti


def _mlp_kernel(x_ref, wgu_ref, wd_ref, o_ref, acc_ref, *, ti):
    """One (token-tile, intermediate-tile) step of down(silu(x@wg)*(x@wu))."""
    k = pl.program_id(1)

    @pl.when(k == 0)
    def _():
        acc_ref[...] = jnp.zeros_like(acc_ref)

    x = x_ref[...]                                              # [tm, H]
    # Fused gate/up GEMM: wgu tile is [gate_k | up_k] -> [tm, 2*ti] in f32.
    gu = jnp.dot(x, wgu_ref[...], preferred_element_type=jnp.float32)
    gate = gu[:, :ti]                                           # [tm, ti]
    up = gu[:, ti:]                                             # [tm, ti]
    h = (gate * jax.nn.sigmoid(gate)) * up                      # SiLU(gate) * up

    # Partial down projection, accumulated in f32 across the I axis.
    acc_ref[...] += jnp.dot(h.astype(wd_ref.dtype), wd_ref[...],
                            preferred_element_type=jnp.float32)

    @pl.when(k == pl.num_programs(1) - 1)
    def _():
        o_ref[...] = acc_ref[...].astype(o_ref.dtype)


def shared_qwen2_moe_mlp(hidden_states, wgu, wd_p, *, ti,
                         block_tokens=None, vmem_budget_bytes=None,
                         vmem_limit_bytes=None, min_token_blocks=None):
    """Forward pass. `wgu`, `wd_p`, `ti` come from prepare_shared_mlp_weights."""
    orig_shape = hidden_states.shape
    H = orig_shape[-1]
    Ip = wd_p.shape[0]
    assert wgu.shape == (H, 2 * Ip) and Ip % ti == 0 and wd_p.shape == (Ip, H)
    nI = Ip // ti

    d = _tpu_defaults()
    block_tokens = d["block_tokens"] if block_tokens is None else block_tokens
    vmem_budget = (d["vmem_budget_bytes"] if vmem_budget_bytes is None
                   else vmem_budget_bytes)
    vmem_limit = (d["vmem_limit_bytes"] if vmem_limit_bytes is None
                  else vmem_limit_bytes)
    min_tb = (d["min_token_blocks"] if min_token_blocks is None
              else min_token_blocks)
    block_tokens = _round_up(max(block_tokens, 8), 8)

    out_dtype = hidden_states.dtype
    x = hidden_states.reshape(-1, H).astype(wgu.dtype)          # compute dtype
    T = x.shape[0]
    io_bytes = jnp.dtype(x.dtype).itemsize
    w_bytes = jnp.dtype(wgu.dtype).itemsize

    # --- token tile: start at per-generation cap, shrink for VMEM, then
    #     balance across blocks (and across v7x's two TensorCores) ---
    tm = min(block_tokens, _round_up(T, 8))
    while tm > 8 and _vmem_est(tm, ti, H, io_bytes, w_bytes) > vmem_budget:
        tm = max(8, _round_up(tm // 2, 8))
    n_blocks = max(min_tb, pl.cdiv(T, tm))
    n_blocks = max(1, min(n_blocks, pl.cdiv(T, 8)))
    tm = _round_up(pl.cdiv(T, n_blocks), 8)
    Tp = n_blocks * tm

    # Zero-padded token rows produce zeros and are sliced off below.
    if Tp != T:
        x = jnp.pad(x, ((0, Tp - T), (0, 0)))

    kernel = functools.partial(_mlp_kernel, ti=ti)
    out = pl.pallas_call(
        kernel,
        out_shape=jax.ShapeDtypeStruct((Tp, H), out_dtype),
        grid_spec=pltpu.PrefetchScalarGridSpec(
            num_scalar_prefetch=0,
            grid=(n_blocks, nI),
            in_specs=[
                pl.BlockSpec((tm, H), lambda i, k: (i, 0)),        # x tile
                pl.BlockSpec((H, 2 * ti), lambda i, k: (0, k)),    # [gate_k|up_k]
                pl.BlockSpec((ti, H), lambda i, k: (k, 0)),        # down W^T tile
            ],
            out_specs=pl.BlockSpec((tm, H), lambda i, k: (i, 0)),
            scratch_shapes=[pltpu.VMEM((tm, H), jnp.float32)],
        ),
        compiler_params=pltpu.CompilerParams(
            dimension_semantics=("parallel", "arbitrary"),
            vmem_limit_bytes=vmem_limit,
        ),
    )(x, wgu, wd_p)

    return out[:T].reshape(orig_shape)


def reference_mlp(hidden_states, wg_t, wu_t, wd_t):
    x = hidden_states.reshape(-1, hidden_states.shape[-1])
    gate = x @ wg_t
    up = x @ wu_t
    h = jax.nn.silu(gate) * up
    return (h @ wd_t).reshape(hidden_states.shape)


if __name__ == "__main__":
    # Small shapes consistent with the module: batch=2, seq=8,
    # hidden_size=128, intermediate_size=256 (TPU-friendly lane widths).
    B, S, H, I = 2, 8, 128, 256

    key = jax.random.PRNGKey(0)
    k_x, k_g, k_u, k_d = jax.random.split(key, 4)

    hidden_states = jax.random.normal(k_x, (B, S, H), dtype=jnp.float32)

    # nn.Linear(in, out).weight has shape (out, in); we store the transposes
    # (in_features, out_features) for the kernel.
    wg_t = (jax.random.normal(k_g, (I, H), dtype=jnp.float32) * 0.02).T
    wu_t = (jax.random.normal(k_u, (I, H), dtype=jnp.float32) * 0.02).T
    wd_t = (jax.random.normal(k_d, (H, I), dtype=jnp.float32) * 0.02).T

    # --- one-time weight prep (weight-load time, not per forward) ---
    wgu, wd_p, ti = prepare_shared_mlp_weights(wg_t, wu_t, wd_t)
    wgu, wd_p = jax.block_until_ready((wgu, wd_p))

    fn = jax.jit(functools.partial(shared_qwen2_moe_mlp, ti=ti))
    out = jax.block_until_ready(fn(hidden_states, wgu, wd_p))
    ref = reference_mlp(hidden_states, wg_t, wu_t, wd_t)
    assert out.shape == hidden_states.shape
    assert jnp.allclose(out, ref, atol=1e-4, rtol=1e-4), "mismatch vs reference"

    # Ragged token count (exercises padding / balanced-tile path).
    hs2 = jax.random.normal(k_x, (1, 13, H), dtype=jnp.float32)
    out2 = jax.block_until_ready(shared_qwen2_moe_mlp(hs2, wgu, wd_p, ti=ti))
    ref2 = reference_mlp(hs2, wg_t, wu_t, wd_t)
    assert out2.shape == hs2.shape
    assert jnp.allclose(out2, ref2, atol=1e-4, rtol=1e-4), "ragged mismatch"

    # Optional bf16 compute path: weights cast once at prep time, x cast in
    # the wrapper, accumulation stays f32 (halves weight HBM traffic).
    wgu_bf, wd_bf, ti_bf = prepare_shared_mlp_weights(
        wg_t, wu_t, wd_t, compute_dtype=jnp.bfloat16)
    out3 = jax.block_until_ready(
        shared_qwen2_moe_mlp(hidden_states, wgu_bf, wd_bf, ti=ti_bf))
    assert out3.shape == hidden_states.shape
    assert jnp.allclose(out3, ref, atol=1e-2, rtol=5e-2), "bf16 path mismatch"

    print("KERNEL_OK")
</pallas_src>

<mosaic_0001>
module attributes {stable_mosaic.version = 11 : i64} {
  func.func @_mlp_kernel(%arg0: i32, %arg1: i32, %arg2: memref<8x128xf32, #tpu.memory_space<vmem>>, %arg3: memref<128x512xf32, #tpu.memory_space<vmem>>, %arg4: memref<256x128xf32, #tpu.memory_space<vmem>>, %arg5: memref<8x128xf32, #tpu.memory_space<vmem>>, %arg6: memref<8x128xf32, #tpu.memory_space<vmem>>) attributes {dimension_semantics = [#tpu.dimension_semantics<parallel>, #tpu.dimension_semantics<arbitrary>], iteration_bounds = array<i64: 2, 1>, scalar_prefetch = 0 : i64, scratch_operands = 1 : i64, tpu.core_type = #tpu.core_type<tc>, window_params = [{transform_indices = @transform_0, window_bounds = array<i64: 8, 128>}, {transform_indices = @transform_1, window_bounds = array<i64: 128, 512>}, {transform_indices = @transform_2, window_bounds = array<i64: 256, 128>}, {transform_indices = @transform_3, window_bounds = array<i64: 8, 128>}]} {
    %c0_i32 = arith.constant 0 : i32
    %0 = arith.cmpi eq, %arg1, %c0_i32 : i32
    %1 = arith.extui %0 : i1 to i32
    %c0_i32_0 = arith.constant 0 : i32
    %2 = arith.cmpi ne, %1, %c0_i32_0 : i32
    scf.if %2 {
      %cst_14 = arith.constant 0.000000e+00 : f32
      %23 = vector.broadcast %cst_14 : f32 to vector<8x128xf32>
      %c0_15 = arith.constant 0 : index
      %c0_16 = arith.constant 0 : index
      %24 = vector.load %arg6[%c0_15, %c0_16] : memref<8x128xf32, #tpu.memory_space<vmem>>, vector<8x128xf32>
      tpu.vector_store %arg6[%c0_15, %c0_16], %23 {strides = array<i32>} : memref<8x128xf32, #tpu.memory_space<vmem>>, vector<8x128xf32>,
    } else {
    }
    %c0 = arith.constant 0 : index
    %c0_1 = arith.constant 0 : index
    %3 = vector.load %arg2[%c0, %c0_1] : memref<8x128xf32, #tpu.memory_space<vmem>>, vector<8x128xf32>
    %c0_2 = arith.constant 0 : index
    %c0_3 = arith.constant 0 : index
    %4 = vector.load %arg3[%c0_2, %c0_3] : memref<128x512xf32, #tpu.memory_space<vmem>>, vector<128x512xf32>
    %cst = arith.constant dense<0.000000e+00> : vector<8x512xf32>
    %5 = tpu.matmul %3, %4, %cst {dimension_numbers = #tpu.dot_dimension_numbers<[1], [0], [0], [1], [0, 0, 1, 1], [], []>} : vector<8x128xf32>, vector<128x512xf32>, vector<8x512xf32> -> vector<8x512xf32>
    %6 = vector.extract_strided_slice %5 {offsets = [0, 0], sizes = [8, 256], strides = [1, 1]} : vector<8x512xf32> to vector<8x256xf32>
    %7 = vector.extract_strided_slice %5 {offsets = [0, 256], sizes = [8, 256], strides = [1, 1]} : vector<8x512xf32> to vector<8x256xf32>
    %8 = arith.negf %6 : vector<8x256xf32>
    %9 = math.exp %8 : vector<8x256xf32>
    %cst_4 = arith.constant 1.000000e+00 : f32
    %10 = vector.broadcast %cst_4 : f32 to vector<8x256xf32>
    %11 = arith.addf %10, %9 : vector<8x256xf32>
    %12 = arith.divf %10, %11 : vector<8x256xf32>
    %13 = arith.mulf %6, %12 : vector<8x256xf32>
    %14 = arith.mulf %13, %7 : vector<8x256xf32>
    %c0_5 = arith.constant 0 : index
    %c0_6 = arith.constant 0 : index
    %15 = vector.load %arg6[%c0_5, %c0_6] : memref<8x128xf32, #tpu.memory_space<vmem>>, vector<8x128xf32>
    %c0_7 = arith.constant 0 : index
    %c0_8 = arith.constant 0 : index
    %16 = vector.load %arg4[%c0_7, %c0_8] : memref<256x128xf32, #tpu.memory_space<vmem>>, vector<256x128xf32>
    %cst_9 = arith.constant dense<0.000000e+00> : vector<8x128xf32>
    %17 = tpu.matmul %14, %16, %cst_9 {dimension_numbers = #tpu.dot_dimension_numbers<[1], [0], [0], [1], [0, 0, 1, 1], [], []>} : vector<8x256xf32>, vector<256x128xf32>, vector<8x128xf32> -> vector<8x128xf32>
    %18 = arith.addf %15, %17 : vector<8x128xf32>
    %c0_10 = arith.constant 0 : index
    %c0_11 = arith.constant 0 : index
    %19 = vector.load %arg6[%c0_10, %c0_11] : memref<8x128xf32, #tpu.memory_space<vmem>>, vector<8x128xf32>
    tpu.vector_store %arg6[%c0_10, %c0_11], %18 {strides = array<i32>} : memref<8x128xf32, #tpu.memory_space<vmem>>, vector<8x128xf32>,
    %c0_i32_12 = arith.constant 0 : i32
    %20 = arith.cmpi eq, %arg1, %c0_i32_12 : i32
    %21 = arith.extui %20 : i1 to i32
    %c0_i32_13 = arith.constant 0 : i32
    %22 = arith.cmpi ne, %21, %c0_i32_13 : i32
    scf.if %22 {
      %c0_14 = arith.constant 0 : index
      %c0_15 = arith.constant 0 : index
      %23 = vector.load %arg6[%c0_14, %c0_15] : memref<8x128xf32, #tpu.memory_space<vmem>>, vector<8x128xf32>
      %c0_16 = arith.constant 0 : index
      %c0_17 = arith.constant 0 : index
      %24 = vector.load %arg5[%c0_16, %c0_17] : memref<8x128xf32, #tpu.memory_space<vmem>>, vector<8x128xf32>
      tpu.vector_store %arg5[%c0_16, %c0_17], %23 {strides = array<i32>} : memref<8x128xf32, #tpu.memory_space<vmem>>, vector<8x128xf32>,
    } else {
    }
    return
  }
  func.func @transform_0(%arg0: i32, %arg1: i32) -> (i32, i32) {
    %c0_i32 = arith.constant 0 : i32
    %c0_i32_0 = arith.constant 0 : i32
    return %arg0, %c0_i32 : i32, i32
  }
  func.func @transform_1(%arg0: i32, %arg1: i32) -> (i32, i32) {
    %c0_i32 = arith.constant 0 : i32
    %c0_i32_0 = arith.constant 0 : i32
    return %c0_i32, %arg1 : i32, i32
  }
  func.func @transform_2(%arg0: i32, %arg1: i32) -> (i32, i32) {
    %c0_i32 = arith.constant 0 : i32
    %c0_i32_0 = arith.constant 0 : i32
    return %arg1, %c0_i32 : i32, i32
  }
  func.func @transform_3(%arg0: i32, %arg1: i32) -> (i32, i32) {
    %c0_i32 = arith.constant 0 : i32
    %c0_i32_0 = arith.constant 0 : i32
    return %arg0, %c0_i32 : i32, i32
  }
}

</mosaic_0001>

<llo_original>
// kernel: shared_qwen2_moe_mlp.1
$region0: #{shared_qwen2_moe_mlp.1}
  #allocation0 [shape = 'u32[]', space=smem, size = 0x4, offset = 0x4, fixed_abs, tag = 'smem constant byte address 0x4 - core index']
  #allocation1 [shape = 'u32[144,128]{1,0:T(1,128)}', space=vmem, size = 0x12000, scoped, tag = 'internal scratch']
  #allocation2 [shape = 'f32[8,128]{1,0:T(8,128)}', space=vmem, size = 0x1000, scoped, tag = 'scratch operand']
  %s0 = inlined_call_operand.hbm [shape: f32[16,128], index: 0, kind: input, shape index: {}]
  %s1 = inlined_call_operand.hbm [shape: f32[128,512], index: 1, kind: input, shape index: {}]
  %s2 = inlined_call_operand.hbm [shape: f32[256,128], index: 2, kind: input, shape index: {}]
  %s3 = inlined_call_operand.hbm [shape: f32[16,128], index: 3, kind: output, shape index: {}]
  %s4 = sld [smem:[#allocation0]]
  $region65: #{shared_qwen2_moe_mlp.1} parent=0
    _
  %s6 = ssub.s32 1, %s4
  %s7 = scalar_select 0, %s6, %s4
  $region1: #{shared_qwen2_moe_mlp.1} parent=0
    #allocation3 [shape = 'u8[8192]{0}', space=vmem, size = 0x2000, scoped, tag = 'input window, operand 0']
    #allocation4 [shape = 's32[2]{0}', space=sflag, size = 0x8, scoped, tag = 'scoped memory for shared_qwen2_moe_mlp.1']
    #allocation5 [shape = 's32[2]{0}', space=sflag, size = 0x8, scoped, tag = 'scoped memory for shared_qwen2_moe_mlp.1']
    #allocation6 [shape = 'u8[262144]{0}', space=vmem, size = 0x40000, scoped, tag = 'input window, operand 1, single buffered']
    #allocation7 [shape = 's32[1]{0}', space=sflag, size = 0x4, scoped, tag = 'scoped memory for shared_qwen2_moe_mlp.1']
    #allocation8 [shape = 'u8[131072]{0}', space=vmem, size = 0x20000, scoped, tag = 'input window, operand 2, single buffered']
    #allocation9 [shape = 'u8[8192]{0}', space=vmem, size = 0x2000, scoped, tag = 'output window, operand 0']
    %8 = vsyncpa [#allocation4], 0
    %s9 = scalar_lea.sflag [#allocation4], 1
    %10 = vsyncpa %s9, 0
    %11 = vsyncpa [#allocation7], 0
    %12 = vsyncpa [#allocation5], 0
    %s13 = scalar_lea.sflag [#allocation5], 1
    %14 = vsyncpa %s13, 0
    loop: start=0, step=1, limit=4
    $region2: #{shared_qwen2_moe_mlp.1} parent=1 // loop_pre_header
      _
    $region3: #{shared_qwen2_moe_mlp.1} parent=1 // loop_header
      %s16 = sphi 0, %s20
      %p17 = scmp.ge.s32.totalorder %s16, 4
      %s23 = sphi 0, %s35
      %s24 = sphi 0, %s31
      %s25 = sphi 0, %s23
      %s26 = sphi 0, %s24
      %s27 = sphi 0, %s25
      %s28 = sphi 0, %s26
      %s38 = sphi 0, %s40
      %s41 = sphi 0, %s38
      %s42 = sphi 0, %s41
      %s58 = sphi 0, %s42
      %s64 = sphi 0, %s66
      %s67 = sphi 0, %s64
      %s68 = sphi 0, %s67
      %s84 = sphi 0, %s68
      %s90 = sphi 0, %s92
      %s93 = sphi 0, %s90
      %s94 = sphi 0, %s93
      %s110 = sphi 0, %s94
      %s116 = sphi 0, %s118
      %s119 = sphi 0, %s116
      %s120 = sphi 0, %s119
      %s136 = sphi 0, %s120
    $region4: #{shared_qwen2_moe_mlp.1} parent=1 // loop_header_branch
      %19 = sbr.rel (%p17) target = $region8
    $region5: #{shared_qwen2_moe_mlp.1} parent=1 // loop_body
      %s21 = ssub.s32 %s16, 1
      %s22 = ssub.s32 %s16, 2
      %s29 = sadd.s32 1, %s24
      %p30 = scmp.ge.s32.totalorder %s29, 1
      %s31 = scalar_select %p30, 0, %s29
      %s32 = sadd.s32 1, %s23
      %s33 = scalar_select %p30, %s32, %s23
      %p34 = scmp.ge.s32.totalorder %s33, 2
      %s35 = scalar_select %p34, 0, %s33
      %s36 = ssub.s32 %s23, %s35
      %p37 = scmp.eq.s32.totalorder %s36, 0
      %s39 = sadd.s32 %s38, 1
      %s40 = scalar_select %p37, %s38, %s39
      %p43 = pneg %p37
      %p44 = scmp.eq.s32.totalorder %s16, 1
      %p45 = por %p43, %p44
      %p46 = scmp.ne.s32.totalorder %s38, %s41
      %p47 = scmp.eq.s32.totalorder %s16, 0
      %p48 = por %p46, %p47
      %p49 = scmp.ne.s32.totalorder %s38, %s41
      %p50 = scmp.eq.s32.totalorder %s21, 1
      %p51 = por %p49, %p50
      %p52 = scmp.ne.s32.totalorder %s41, %s42
      %p53 = scmp.eq.s32.totalorder %s21, 0
      %p54 = por %p52, %p53
      %p55 = scmp.ne.s32.totalorder %s41, %s42
      %p56 = scmp.eq.s32.totalorder %s22, 1
      %p57 = por %p55, %p56
      %p59 = scmp.ne.s32.totalorder %s42, %s58
      %p60 = scmp.eq.s32.totalorder %s22, 0
      %p61 = por %p59, %p60
      %s62 = ssub.s32 %s24, %s31
      %p63 = scmp.eq.s32.totalorder %s62, 0
      %s65 = sadd.s32 %s64, 1
      %s66 = scalar_select %p63, %s64, %s65
      %p69 = pneg %p63
      %p70 = scmp.eq.s32.totalorder %s16, 1
      %p71 = por %p69, %p70
      %p72 = scmp.ne.s32.totalorder %s64, %s67
      %p73 = scmp.eq.s32.totalorder %s16, 0
      %p74 = por %p72, %p73
      %p75 = scmp.ne.s32.totalorder %s64, %s67
      %p76 = scmp.eq.s32.totalorder %s21, 1
      %p77 = por %p75, %p76
      %p78 = scmp.ne.s32.totalorder %s67, %s68
      %p79 = scmp.eq.s32.totalorder %s21, 0
      %p80 = por %p78, %p79
      %p81 = scmp.ne.s32.totalorder %s67, %s68
      %p82 = scmp.eq.s32.totalorder %s22, 1
      %p83 = por %p81, %p82
      %p85 = scmp.ne.s32.totalorder %s68, %s84
      %p86 = scmp.eq.s32.totalorder %s22, 0
      %p87 = por %p85, %p86
      %s88 = ssub.s32 %s24, %s31
      %p89 = scmp.eq.s32.totalorder %s88, 0
      %s91 = sadd.s32 %s90, 1
      %s92 = scalar_select %p89, %s90, %s91
      %p95 = pneg %p89
      %p96 = scmp.eq.s32.totalorder %s16, 1
      %p97 = por %p95, %p96
      %p98 = scmp.ne.s32.totalorder %s90, %s93
      %p99 = scmp.eq.s32.totalorder %s16, 0
      %p100 = por %p98, %p99
      %p101 = scmp.ne.s32.totalorder %s90, %s93
      %p102 = scmp.eq.s32.totalorder %s21, 1
      %p103 = por %p101, %p102
      %p104 = scmp.ne.s32.totalorder %s93, %s94
      %p105 = scmp.eq.s32.totalorder %s21, 0
      %p106 = por %p104, %p105
      %p107 = scmp.ne.s32.totalorder %s93, %s94
      %p108 = scmp.eq.s32.totalorder %s22, 1
      %p109 = por %p107, %p108
      %p111 = scmp.ne.s32.totalorder %s94, %s110
      %p112 = scmp.eq.s32.totalorder %s22, 0
      %p113 = por %p111, %p112
      %s114 = ssub.s32 %s23, %s35
      %p115 = scmp.eq.s32.totalorder %s114, 0
      %s117 = sadd.s32 %s116, 1
      %s118 = scalar_select %p115, %s116, %s117
      %p121 = pneg %p115
      %p122 = scmp.eq.s32.totalorder %s16, 1
      %p123 = por %p121, %p122
      %p124 = scmp.ne.s32.totalorder %s116, %s119
      %p125 = scmp.eq.s32.totalorder %s16, 0
      %p126 = por %p124, %p125
      %p127 = scmp.ne.s32.totalorder %s116, %s119
      %p128 = scmp.eq.s32.totalorder %s21, 1
      %p129 = por %p127, %p128
      %p130 = scmp.ne.s32.totalorder %s119, %s120
      %p131 = scmp.eq.s32.totalorder %s21, 0
      %p132 = por %p130, %p131
      %p133 = scmp.ne.s32.totalorder %s119, %s120
      %p134 = scmp.eq.s32.totalorder %s22, 1
      %p135 = por %p133, %p134
      %p137 = scmp.ne.s32.totalorder %s120, %s136
      %p138 = scmp.eq.s32.totalorder %s22, 0
      %p139 = por %p137, %p138
      %p140 = scmp.le.s32.totalorder 1, %s16
      %p141 = scmp.lt.s32.totalorder %s16, 3
      %p142 = pnand %p140, %p141
      %p143 = pneg %p142
      // Predicated region
      $region9: #{shared_qwen2_moe_mlp.1} parent=5 // pred_check
        _
      $region10: #{shared_qwen2_moe_mlp.1} parent=5 // pred_check_branch
        %145 = sbr.rel (%p142) target = $region12
      $region11: #{shared_qwen2_moe_mlp.1} parent=5 // pred_region
        %s146 = ssub.s32 %s16, 1
        // Predicated region
        $region13: #{shared_qwen2_moe_mlp.1} parent=11 // pred_check
          %p147 = pneg %p80
        $region14: #{shared_qwen2_moe_mlp.1} parent=11 // pred_check_branch
          %149 = sbr.rel (%p147) target = $region16
        $region15: #{shared_qwen2_moe_mlp.1} parent=11 // pred_region
          %s150 = smul.u32 4, %s26
          %s152 = ssub.s32 8192, 8192
          %153 = vsyncadd [#allocation7], %s152
          %s154 = smul.addr %s150, 128
          %s155 = scalar_lea.hbm %s1, %s154
          %s156 = sshll.u32 [#allocation6], 4
          %s157 = int_to_ptr.vmem [resolvable:$true] %s156
          %162 = dma.hbm_to_vmem [thread:$0]  %s155, 8192, %s157, [#allocation7], 512, 512, 32
        $region16: #{shared_qwen2_moe_mlp.1} parent=11 // pred_fallthru
          _
        // Predicated region
        $region17: #{shared_qwen2_moe_mlp.1} parent=11 // pred_check
          %p163 = pneg %p106
        $region18: #{shared_qwen2_moe_mlp.1} parent=11 // pred_check_branch
          %165 = sbr.rel (%p163) target = $region20
        $region19: #{shared_qwen2_moe_mlp.1} parent=11 // pred_region
          %s166 = smul.u32 32, %s26
          %s168 = ssub.s32 4096, 4096
          %169 = vsyncadd [#allocation7], %s168
          %s170 = smul.addr %s166, 128
          %s171 = scalar_lea.hbm %s2, %s170
          %s172 = sshll.u32 [#allocation8], 4
          %s173 = int_to_ptr.vmem [resolvable:$true] %s172
          %178 = dma.hbm_to_vmem [thread:$0]  %s171, 4096, %s173, [#allocation7], 128, 128, 8
        $region20: #{shared_qwen2_moe_mlp.1} parent=11 // pred_fallthru
          _
      $region12: #{shared_qwen2_moe_mlp.1} parent=5 // pred_fallthru
        _
      %p179 = scmp.lt.s32.totalorder %s16, 2
      // Predicated region
      $region21: #{shared_qwen2_moe_mlp.1} parent=5 // pred_check
        %p180 = pneg %p179
      $region22: #{shared_qwen2_moe_mlp.1} parent=5 // pred_check_branch
        %182 = sbr.rel (%p180) target = $region24
      $region23: #{shared_qwen2_moe_mlp.1} parent=5 // pred_region
        // Predicated region
        $region25: #{shared_qwen2_moe_mlp.1} parent=23 // pred_check
          %p183 = pneg %p48
        $region26: #{shared_qwen2_moe_mlp.1} parent=23 // pred_check_branch
          %185 = sbr.rel (%p183) target = $region28
        $region27: #{shared_qwen2_moe_mlp.1} parent=23 // pred_region
          %s186 = sand.u32 %s38, 1
          %s187 = scalar_lea.sflag [#allocation4], %s186
          %s188 = sand.u32 %s38, 1
          %s189 = smul.addr %s188, 8
          %s190 = scalar_lea.vmem [#allocation3], %s189
          %s192 = ssub.s32 128, 128
          %193 = vsyncadd %s187, %s192
          %s194 = smul.addr %s23, 128
          %s195 = scalar_lea.hbm %s0, %s194
          %s197 = sshll.u32 %s190, 4
          %s198 = int_to_ptr.vmem [resolvable:$true] %s197
          %200 = dma.hbm_to_vmem [thread:$0]  %s195, 128, %s198, %s187
        $region28: #{shared_qwen2_moe_mlp.1} parent=23 // pred_fallthru
          _
      $region24: #{shared_qwen2_moe_mlp.1} parent=5 // pred_fallthru
        _
      %p201 = scmp.le.s32.totalorder 1, %s16
      %p202 = scmp.lt.s32.totalorder %s16, 3
      %p203 = pnand %p201, %p202
      %p204 = pneg %p203
      // Predicated region
      $region29: #{shared_qwen2_moe_mlp.1} parent=5 // pred_check
        _
      $region30: #{shared_qwen2_moe_mlp.1} parent=5 // pred_check_branch
        %206 = sbr.rel (%p203) target = $region32
      $region31: #{shared_qwen2_moe_mlp.1} parent=5 // pred_region
        %s207 = ssub.s32 %s16, 1
        %s208 = sand.u32 %s41, 1
        %s209 = scalar_lea.sflag [#allocation4], %s208
        %s210 = sand.u32 %s41, 1
        %s211 = smul.addr %s210, 8
        %s212 = scalar_lea.vmem [#allocation3], %s211
        // Predicated region
        $region33: #{shared_qwen2_moe_mlp.1} parent=31 // pred_check
          %p213 = pneg %p54
        $region34: #{shared_qwen2_moe_mlp.1} parent=31 // pred_check_branch
          %215 = sbr.rel (%p213) target = $region36
        $region35: #{shared_qwen2_moe_mlp.1} parent=31 // pred_region
          %216 = dma.done %s209, 128
        $region36: #{shared_qwen2_moe_mlp.1} parent=31 // pred_fallthru
          _
        // Predicated region
        $region37: #{shared_qwen2_moe_mlp.1} parent=31 // pred_check
          %p217 = pneg %p80
        $region38: #{shared_qwen2_moe_mlp.1} parent=31 // pred_check_branch
          %219 = sbr.rel (%p217) target = $region40
        $region39: #{shared_qwen2_moe_mlp.1} parent=31 // pred_region
          %220 = dma.done [#allocation7], 8192
        $region40: #{shared_qwen2_moe_mlp.1} parent=31 // pred_fallthru
          _
        // Predicated region
        $region41: #{shared_qwen2_moe_mlp.1} parent=31 // pred_check
          %p221 = pneg %p106
        $region42: #{shared_qwen2_moe_mlp.1} parent=31 // pred_check_branch
          %223 = sbr.rel (%p221) target = $region44
        $region43: #{shared_qwen2_moe_mlp.1} parent=31 // pred_region
          %224 = dma.done [#allocation7], 4096
        $region44: #{shared_qwen2_moe_mlp.1} parent=31 // pred_fallthru
          _
        %s225 = sand.u32 %s41, 1
        %s226 = scalar_lea.sflag [#allocation4], %s225
        %s227 = sand.u32 %s41, 1
        %s228 = smul.addr %s227, 8
        %s229 = scalar_lea.vmem [#allocation3], %s228
        %p230 = pneg %p54
        %p231 = pneg %p51
        %p232 = pneg %p80
        %p233 = pneg %p77
        %p234 = pneg %p106
        %p235 = pneg %p103
        %p236 = pneg %p132
        %p237 = pneg %p129
        %s238 = sand.u32 %s119, 1
        %s239 = scalar_lea.sflag [#allocation5], %s238
        %s240 = sand.u32 %s119, 1
        %s241 = smul.addr %s240, 8
        %s242 = scalar_lea.vmem [#allocation9], %s241
        %s243 = smul.u32 4, %s26
        %s244 = smul.u32 32, %s26
        %p245 = scmp.eq.s32.totalorder %s26, 0
        // Predicated region
        $region45: #{shared_qwen2_moe_mlp.1} parent=31 // pred_check
          %p246 = pneg %p245
        $region46: #{shared_qwen2_moe_mlp.1} parent=31 // pred_check_branch
          %248 = sbr.rel (%p246) target = $region48
        $region47: #{shared_qwen2_moe_mlp.1} parent=31 // pred_region
          %249 = vst [vmem:[#allocation2] sm:$0xff] 0.0
        $region48: #{shared_qwen2_moe_mlp.1} parent=31 // pred_fallthru
          _
        %v250 = vld [vmem:[%s212] sm:$0xff]
        %v251 = vld [vmem:[#allocation6] sm:$0xff]
        %v252 = vld [vmem:[#allocation6 + $0x8] sm:$0xff]
        %v253 = vld [vmem:[#allocation6 + $0x10] sm:$0xff]
        %v254 = vld [vmem:[#allocation6 + $0x18] sm:$0xff]
        %v255 = vld [vmem:[#allocation6 + $0x20] sm:$0xff]
        %v256 = vld [vmem:[#allocation6 + $0x28] sm:$0xff]
        %v257 = vld [vmem:[#allocation6 + $0x30] sm:$0xff]
        %v258 = vld [vmem:[#allocation6 + $0x38] sm:$0xff]
        %v259 = vld [vmem:[#allocation6 + $0x40] sm:$0xff]
        %v260 = vld [vmem:[#allocation6 + $0x48] sm:$0xff]
        %v261 = vld [vmem:[#allocation6 + $0x50] sm:$0xff]
        %v262 = vld [vmem:[#allocation6 + $0x58] sm:$0xff]
        %v263 = vld [vmem:[#allocation6 + $0x60] sm:$0xff]
        %v264 = vld [vmem:[#allocation6 + $0x68] sm:$0xff]
        %v265 = vld [vmem:[#allocation6 + $0x70] sm:$0xff]
        %v266 = vld [vmem:[#allocation6 + $0x78] sm:$0xff]
        %v267 = vld [vmem:[#allocation6 + $0x80] sm:$0xff]
        %v268 = vld [vmem:[#allocation6 + $0x88] sm:$0xff]
        %v269 = vld [vmem:[#allocation6 + $0x90] sm:$0xff]
        %v270 = vld [vmem:[#allocation6 + $0x98] sm:$0xff]
        %v271 = vld [vmem:[#allocation6 + $0xa0] sm:$0xff]
        %v272 = vld [vmem:[#allocation6 + $0xa8] sm:$0xff]
        %v273 = vld [vmem:[#allocation6 + $0xb0] sm:$0xff]
        %v274 = vld [vmem:[#allocation6 + $0xb8] sm:$0xff]
        %v275 = vld [vmem:[#allocation6 + $0xc0] sm:$0xff]
        %v276 = vld [vmem:[#allocation6 + $0xc8] sm:$0xff]
        %v277 = vld [vmem:[#allocation6 + $0xd0] sm:$0xff]
        %v278 = vld [vmem:[#allocation6 + $0xd8] sm:$0xff]
        %v279 = vld [vmem:[#allocation6 + $0xe0] sm:$0xff]
        %v280 = vld [vmem:[#allocation6 + $0xe8] sm:$0xff]
        %v281 = vld [vmem:[#allocation6 + $0xf0] sm:$0xff]
        %v282 = vld [vmem:[#allocation6 + $0xf8] sm:$0xff]
        %v283 = vld [vmem:[#allocation6 + $0x100] sm:$0xff]
        %v284 = vld [vmem:[#allocation6 + $0x108] sm:$0xff]
        %v285 = vld [vmem:[#allocation6 + $0x110] sm:$0xff]
        %v286 = vld [vmem:[#allocation6 + $0x118] sm:$0xff]
        %v287 = vld [vmem:[#allocation6 + $0x120] sm:$0xff]
        %v288 = vld [vmem:[#allocation6 + $0x128] sm:$0xff]
        %v289 = vld [vmem:[#allocation6 + $0x130] sm:$0xff]
        %v290 = vld [vmem:[#allocation6 + $0x138] sm:$0xff]
        %v291 = vld [vmem:[#allocation6 + $0x140] sm:$0xff]
        %v292 = vld [vmem:[#allocation6 + $0x148] sm:$0xff]
        %v293 = vld [vmem:[#allocation6 + $0x150] sm:$0xff]
        %v294 = vld [vmem:[#allocation6 + $0x158] sm:$0xff]
        %v295 = vld [vmem:[#allocation6 + $0x160] sm:$0xff]
        %v296 = vld [vmem:[#allocation6 + $0x168] sm:$0xff]
        %v297 = vld [vmem:[#allocation6 + $0x170] sm:$0xff]
        %v298 = vld [vmem:[#allocation6 + $0x178] sm:$0xff]
        %v299 = vld [vmem:[#allocation6 + $0x180] sm:$0xff]
        %v300 = vld [vmem:[#allocation6 + $0x188] sm:$0xff]
        %v301 = vld [vmem:[#allocation6 + $0x190] sm:$0xff]
        %v302 = vld [vmem:[#allocation6 + $0x198] sm:$0xff]
        %v303 = vld [vmem:[#allocation6 + $0x1a0] sm:$0xff]
        %v304 = vld [vmem:[#allocation6 + $0x1a8] sm:$0xff]
        %v305 = vld [vmem:[#allocation6 + $0x1b0] sm:$0xff]
        %v306 = vld [vmem:[#allocation6 + $0x1b8] sm:$0xff]
        %v307 = vld [vmem:[#allocation6 + $0x1c0] sm:$0xff]
        %v308 = vld [vmem:[#allocation6 + $0x1c8] sm:$0xff]
        %v309 = vld [vmem:[#allocation6 + $0x1d0] sm:$0xff]
        %v310 = vld [vmem:[#allocation6 + $0x1d8] sm:$0xff]
        %v311 = vld [vmem:[#allocation6 + $0x1e0] sm:$0xff]
        %v312 = vld [vmem:[#allocation6 + $0x1e8] sm:$0xff]
        %v313 = vld [vmem:[#allocation6 + $0x1f0] sm:$0xff]
        %v314 = vld [vmem:[#allocation6 + $0x1f8] sm:$0xff]
        %315 = vmatprep.subr.mxu0 %v252
        %316 = vmatpush1.msra.mxu0 %v251
        %317 = vmatprep.subr.mxu0 %v256
        %318 = vmatpush1.msra.mxu0 %v255
        %319 = vmatprep.subr.mxu0 %v260
        %320 = vmatpush1.msra.mxu0 %v259
        %321 = vmatprep.subr.mxu0 %v264
        %322 = vmatpush1.msra.mxu0 %v263
        %323 = vmatprep.subr.mxu0 %v268
        %324 = vmatpush1.msra.mxu0 %v267
        %325 = vmatprep.subr.mxu0 %v272
        %326 = vmatpush1.msra.mxu0 %v271
        %327 = vmatprep.subr.mxu0 %v276
        %328 = vmatpush1.msra.mxu0 %v275
        %329 = vmatprep.subr.mxu0 %v280
        %330 = vmatpush1.msra.mxu0 %v279
        %331 = vmatprep.subr.mxu0 %v284
        %332 = vmatpush1.msra.mxu0 %v283
        %333 = vmatprep.subr.mxu0 %v288
        %334 = vmatpush1.msra.mxu0 %v287
        %335 = vmatprep.subr.mxu0 %v292
        %336 = vmatpush1.msra.mxu0 %v291
        %337 = vmatprep.subr.mxu0 %v296
        %338 = vmatpush1.msra.mxu0 %v295
        %339 = vmatprep.subr.mxu0 %v300
        %340 = vmatpush1.msra.mxu0 %v299
        %341 = vmatprep.subr.mxu0 %v304
        %342 = vmatpush1.msra.mxu0 %v303
        %343 = vmatprep.subr.mxu0 %v308
        %344 = vmatpush1.msra.mxu0 %v307
        %345 = vmatprep.subr.mxu0 %v312
        %346 = vmatpush1.msra.mxu0 %v311
        %347 = vmatprep.subr.mxu0 0.0
        %348 = vmatpush1.msra.mxu0 0.0
        %349 = vmatprep.subr.mxu0 0.0
        %350 = vmatpush1.msra.mxu0 0.0
        %351 = vmatprep.subr.mxu0 0.0
        %352 = vmatpush1.msra.mxu0 0.0
        %353 = vmatprep.subr.mxu0 0.0
        %354 = vmatpush1.msra.mxu0 0.0
        %355 = vmatprep.subr.mxu0 0.0
        %356 = vmatpush1.msra.mxu0 0.0
        %357 = vmatprep.subr.mxu0 0.0
        %358 = vmatpush1.msra.mxu0 0.0
        %359 = vmatprep.subr.mxu0 0.0
        %360 = vmatpush1.msra.mxu0 0.0
        %361 = vmatprep.subr.mxu0 0.0
        %362 = vmatpush1.msra.mxu0 0.0
        %363 = vmatprep.subr.mxu0 0.0
        %364 = vmatpush1.msra.mxu0 0.0
        %365 = vmatprep.subr.mxu0 0.0
        %366 = vmatpush1.msra.mxu0 0.0
        %367 = vmatprep.subr.mxu0 0.0
        %368 = vmatpush1.msra.mxu0 0.0
        %369 = vmatprep.subr.mxu0 0.0
        %370 = vmatpush1.msra.mxu0 0.0
        %371 = vmatprep.subr.mxu0 0.0
        %372 = vmatpush1.msra.mxu0 0.0
        %373 = vmatprep.subr.mxu0 0.0
        %374 = vmatpush1.msra.mxu0 0.0
        %375 = vmatprep.subr.mxu0 0.0
        %376 = vmatpush1.msra.mxu0 0.0
        %377 = vmatprep.subr.mxu0 0.0
        %378 = vmatpush1.msra.mxu0 0.0
        %379 = vmatprep.mubr.f32.mxu0 0.0
        %380 = vmatmul.mubr.f32.gmra.mrb[0].mxu0 %v250
        %v381 = vpop.f32.mrb[0].mxu0
        %v382 = vadd.f32 0.0, %v381
        %v383 = vpop.f32.mrb[0].mxu0
        %v384 = vadd.f32 0.0, %v383
        %385 = vdwg.mxu0
        %386 = vmatprep.subr.mxu0 %v254
        %387 = vmatpush1.msra.mxu0 %v253
        %388 = vmatprep.subr.mxu0 %v258
        %389 = vmatpush1.msra.mxu0 %v257
        %390 = vmatprep.subr.mxu0 %v262
        %391 = vmatpush1.msra.mxu0 %v261
        %392 = vmatprep.subr.mxu0 %v266
        %393 = vmatpush1.msra.mxu0 %v265
        %394 = vmatprep.subr.mxu0 %v270
        %395 = vmatpush1.msra.mxu0 %v269
        %396 = vmatprep.subr.mxu0 %v274
        %397 = vmatpush1.msra.mxu0 %v273
        %398 = vmatprep.subr.mxu0 %v278
        %399 = vmatpush1.msra.mxu0 %v277
        %400 = vmatprep.subr.mxu0 %v282
        %401 = vmatpush1.msra.mxu0 %v281
        %402 = vmatprep.subr.mxu0 %v286
        %403 = vmatpush1.msra.mxu0 %v285
        %404 = vmatprep.subr.mxu0 %v290
        %405 = vmatpush1.msra.mxu0 %v289
        %406 = vmatprep.subr.mxu0 %v294
        %407 = vmatpush1.msra.mxu0 %v293
        %408 = vmatprep.subr.mxu0 %v298
        %409 = vmatpush1.msra.mxu0 %v297
        %410 = vmatprep.subr.mxu0 %v302
        %411 = vmatpush1.msra.mxu0 %v301
        %412 = vmatprep.subr.mxu0 %v306
        %413 = vmatpush1.msra.mxu0 %v305
        %414 = vmatprep.subr.mxu0 %v310
        %415 = vmatpush1.msra.mxu0 %v309
        %416 = vmatprep.subr.mxu0 %v314
        %417 = vmatpush1.msra.mxu0 %v313
        %418 = vmatprep.subr.mxu0 0.0
        %419 = vmatpush1.msra.mxu0 0.0
        %420 = vmatprep.subr.mxu0 0.0
        %421 = vmatpush1.msra.mxu0 0.0
        %422 = vmatprep.subr.mxu0 0.0
        %423 = vmatpush1.msra.mxu0 0.0
        %424 = vmatprep.subr.mxu0 0.0
        %425 = vmatpush1.msra.mxu0 0.0
        %426 = vmatprep.subr.mxu0 0.0
        %427 = vmatpush1.msra.mxu0 0.0
        %428 = vmatprep.subr.mxu0 0.0
        %429 = vmatpush1.msra.mxu0 0.0
        %430 = vmatprep.subr.mxu0 0.0
        %431 = vmatpush1.msra.mxu0 0.0
        %432 = vmatprep.subr.mxu0 0.0
        %433 = vmatpush1.msra.mxu0 0.0
        %434 = vmatprep.subr.mxu0 0.0
        %435 = vmatpush1.msra.mxu0 0.0
        %436 = vmatprep.subr.mxu0 0.0
        %437 = vmatpush1.msra.mxu0 0.0
        %438 = vmatprep.subr.mxu0 0.0
        %439 = vmatpush1.msra.mxu0 0.0
        %440 = vmatprep.subr.mxu0 0.0
        %441 = vmatpush1.msra.mxu0 0.0
        %442 = vmatprep.subr.mxu0 0.0
        %443 = vmatpush1.msra.mxu0 0.0
        %444 = vmatprep.subr.mxu0 0.0
        %445 = vmatpush1.msra.mxu0 0.0
        %446 = vmatprep.subr.mxu0 0.0
        %447 = vmatpush1.msra.mxu0 0.0
        %448 = vmatprep.subr.mxu0 0.0
        %449 = vmatpush1.msra.mxu0 0.0
        %450 = vmatprep.mubr.f32.mxu0 0.0
        %451 = vmatmul.mubr.f32.gmra.mrb[0].mxu0 %v250
        %v452 = vpop.f32.mrb[0].mxu0
        %v453 = vadd.f32 0.0, %v452
        %v454 = vpop.f32.mrb[0].mxu0
        %v455 = vadd.f32 0.0, %v454
        %456 = vdwg.mxu0
        %v457 = vxor.u32 %v382, 2147483648
        %v458 = vxor.u32 %v384, 2147483648
        %v459 = vmul.f32 %v457, 1.442695
        %v460 = vpow.pop %v459
        %v461 = vmul.f32 %v458, 1.442695
        %v462 = vpow.pop %v461
        %v463 = vadd.f32 %v460, 1.0
        %v464 = vadd.f32 %v462, 1.0
        %v465 = vrcp.pop %v463
        %v466 = vmul.f32 1.0, %v465
        %v467 = vrcp.pop %v464
        %v468 = vmul.f32 1.0, %v467
        %v469 = vmul.f32 %v382, %v466
        %v470 = vmul.f32 %v384, %v468
        %v471 = vmul.f32 %v469, %v453
        %v472 = vmul.f32 %v470, %v455
        %v473 = vld [vmem:[#allocation2] sm:$0xff]
        %v474 = vld [vmem:[#allocation8] sm:$0xff]
        %v475 = vld [vmem:[#allocation8 + $0x8] sm:$0xff]
        %v476 = vld [vmem:[#allocation8 + $0x10] sm:$0xff]
        %v477 = vld [vmem:[#allocation8 + $0x18] sm:$0xff]
        %v478 = vld [vmem:[#allocation8 + $0x20] sm:$0xff]
        %v479 = vld [vmem:[#allocation8 + $0x28] sm:$0xff]
        %v480 = vld [vmem:[#allocation8 + $0x30] sm:$0xff]
        %v481 = vld [vmem:[#allocation8 + $0x38] sm:$0xff]
        %v482 = vld [vmem:[#allocation8 + $0x40] sm:$0xff]
        %v483 = vld [vmem:[#allocation8 + $0x48] sm:$0xff]
        %v484 = vld [vmem:[#allocation8 + $0x50] sm:$0xff]
        %v485 = vld [vmem:[#allocation8 + $0x58] sm:$0xff]
        %v486 = vld [vmem:[#allocation8 + $0x60] sm:$0xff]
        %v487 = vld [vmem:[#allocation8 + $0x68] sm:$0xff]
        %v488 = vld [vmem:[#allocation8 + $0x70] sm:$0xff]
        %v489 = vld [vmem:[#allocation8 + $0x78] sm:$0xff]
        %v490 = vld [vmem:[#allocation8 + $0x80] sm:$0xff]
        %v491 = vld [vmem:[#allocation8 + $0x88] sm:$0xff]
        %v492 = vld [vmem:[#allocation8 + $0x90] sm:$0xff]
        %v493 = vld [vmem:[#allocation8 + $0x98] sm:$0xff]
        %v494 = vld [vmem:[#allocation8 + $0xa0] sm:$0xff]
        %v495 = vld [vmem:[#allocation8 + $0xa8] sm:$0xff]
        %v496 = vld [vmem:[#allocation8 + $0xb0] sm:$0xff]
        %v497 = vld [vmem:[#allocation8 + $0xb8] sm:$0xff]
        %v498 = vld [vmem:[#allocation8 + $0xc0] sm:$0xff]
        %v499 = vld [vmem:[#allocation8 + $0xc8] sm:$0xff]
        %v500 = vld [vmem:[#allocation8 + $0xd0] sm:$0xff]
        %v501 = vld [vmem:[#allocation8 + $0xd8] sm:$0xff]
        %v502 = vld [vmem:[#allocation8 + $0xe0] sm:$0xff]
        %v503 = vld [vmem:[#allocation8 + $0xe8] sm:$0xff]
        %v504 = vld [vmem:[#allocation8 + $0xf0] sm:$0xff]
        %v505 = vld [vmem:[#allocation8 + $0xf8] sm:$0xff]
        %506 = vmatprep.subr.mxu0 0.0
        %507 = vmatpush1.msra.mxu0 %v474
        %508 = vmatprep.subr.mxu0 0.0
        %509 = vmatpush1.msra.mxu0 %v475
        %510 = vmatprep.subr.mxu0 0.0
        %511 = vmatpush1.msra.mxu0 %v476
        %512 = vmatprep.subr.mxu0 0.0
        %513 = vmatpush1.msra.mxu0 %v477
        %514 = vmatprep.subr.mxu0 0.0
        %515 = vmatpush1.msra.mxu0 %v478
        %516 = vmatprep.subr.mxu0 0.0
        %517 = vmatpush1.msra.mxu0 %v479
        %518 = vmatprep.subr.mxu0 0.0
        %519 = vmatpush1.msra.mxu0 %v480
        %520 = vmatprep.subr.mxu0 0.0
        %521 = vmatpush1.msra.mxu0 %v481
        %522 = vmatprep.subr.mxu0 0.0
        %523 = vmatpush1.msra.mxu0 %v482
        %524 = vmatprep.subr.mxu0 0.0
        %525 = vmatpush1.msra.mxu0 %v483
        %526 = vmatprep.subr.mxu0 0.0
        %527 = vmatpush1.msra.mxu0 %v484
        %528 = vmatprep.subr.mxu0 0.0
        %529 = vmatpush1.msra.mxu0 %v485
        %530 = vmatprep.subr.mxu0 0.0
        %531 = vmatpush1.msra.mxu0 %v486
        %532 = vmatprep.subr.mxu0 0.0
        %533 = vmatpush1.msra.mxu0 %v487
        %534 = vmatprep.subr.mxu0 0.0
        %535 = vmatpush1.msra.mxu0 %v488
        %536 = vmatprep.subr.mxu0 0.0
        %537 = vmatpush1.msra.mxu0 %v489
        %538 = vmatprep.subr.mxu0 0.0
        %539 = vmatpush1.msra.mxu0 %v490
        %540 = vmatprep.subr.mxu0 0.0
        %541 = vmatpush1.msra.mxu0 %v491
        %542 = vmatprep.subr.mxu0 0.0
        %543 = vmatpush1.msra.mxu0 %v492
        %544 = vmatprep.subr.mxu0 0.0
        %545 = vmatpush1.msra.mxu0 %v493
        %546 = vmatprep.subr.mxu0 0.0
        %547 = vmatpush1.msra.mxu0 %v494
        %548 = vmatprep.subr.mxu0 0.0
        %549 = vmatpush1.msra.mxu0 %v495
        %550 = vmatprep.subr.mxu0 0.0
        %551 = vmatpush1.msra.mxu0 %v496
        %552 = vmatprep.subr.mxu0 0.0
        %553 = vmatpush1.msra.mxu0 %v497
        %554 = vmatprep.subr.mxu0 0.0
        %555 = vmatpush1.msra.mxu0 %v498
        %556 = vmatprep.subr.mxu0 0.0
        %557 = vmatpush1.msra.mxu0 %v499
        %558 = vmatprep.subr.mxu0 0.0
        %559 = vmatpush1.msra.mxu0 %v500
        %560 = vmatprep.subr.mxu0 0.0
        %561 = vmatpush1.msra.mxu0 %v501
        %562 = vmatprep.subr.mxu0 0.0
        %563 = vmatpush1.msra.mxu0 %v502
        %564 = vmatprep.subr.mxu0 0.0
        %565 = vmatpush1.msra.mxu0 %v503
        %566 = vmatprep.subr.mxu0 0.0
        %567 = vmatpush1.msra.mxu0 %v504
        %568 = vmatprep.subr.mxu0 0.0
        %569 = vmatpush1.msra.mxu0 %v505
        %570 = vmatprep.mubr.f32.mxu0 %v472
        %571 = vmatmul.mubr.f32.gmra.mrb[0].mxu0 %v471
        %v572 = vpop.f32.mrb[0].mxu0
        %v573 = vadd.f32 0.0, %v572
        %v574 = vpop.f32.mrb[0].mxu0
        %575 = vdwg.mxu0
        %v576 = vadd.f32 %v473, %v573
        %577 = vst [vmem:[#allocation2] sm:$0xff] %v576
        // Predicated region
        $region49: #{shared_qwen2_moe_mlp.1} parent=31 // pred_check
          %p578 = pneg %p245
        $region50: #{shared_qwen2_moe_mlp.1} parent=31 // pred_check_branch
          %580 = sbr.rel (%p578) target = $region52
        $region51: #{shared_qwen2_moe_mlp.1} parent=31 // pred_region
          %v581 = vld [vmem:[#allocation2] sm:$0xff]
          %582 = vst [vmem:[%s242] sm:$0xff] %v581
        $region52: #{shared_qwen2_moe_mlp.1} parent=31 // pred_fallthru
          _
        %s583 = sand.u32 %s119, 1
        %s584 = scalar_lea.sflag [#allocation5], %s583
        %s585 = sand.u32 %s119, 1
        %s586 = smul.addr %s585, 8
        %s587 = scalar_lea.vmem [#allocation9], %s586
        // Predicated region
        $region53: #{shared_qwen2_moe_mlp.1} parent=31 // pred_check
          %p588 = pneg %p129
        $region54: #{shared_qwen2_moe_mlp.1} parent=31 // pred_check_branch
          %590 = sbr.rel (%p588) target = $region56
        $region55: #{shared_qwen2_moe_mlp.1} parent=31 // pred_region
          %s592 = ssub.s32 128, 128
          %593 = vsyncadd %s584, %s592
          %s594 = smul.addr %s25, 128
          %s595 = scalar_lea.hbm %s3, %s594
          %s597 = sshll.u32 %s587, 4
          %s598 = int_to_ptr.vmem [resolvable:$true] %s597
          %600 = dma.vmem_to_hbm [thread:$0]  %s598, 128, %s595, %s584
        $region56: #{shared_qwen2_moe_mlp.1} parent=31 // pred_fallthru
          _
      $region32: #{shared_qwen2_moe_mlp.1} parent=5 // pred_fallthru
        _
      %p601 = scmp.le.s32.totalorder 2, %s16
      // Predicated region
      $region57: #{shared_qwen2_moe_mlp.1} parent=5 // pred_check
        %p602 = pneg %p601
      $region58: #{shared_qwen2_moe_mlp.1} parent=5 // pred_check_branch
        %604 = sbr.rel (%p602) target = $region60
      $region59: #{shared_qwen2_moe_mlp.1} parent=5 // pred_region
        %s605 = ssub.s32 %s16, 2
        // Predicated region
        $region61: #{shared_qwen2_moe_mlp.1} parent=59 // pred_check
          %p606 = pneg %p135
        $region62: #{shared_qwen2_moe_mlp.1} parent=59 // pred_check_branch
          %608 = sbr.rel (%p606) target = $region64
        $region63: #{shared_qwen2_moe_mlp.1} parent=59 // pred_region
          %s609 = sand.u32 %s120, 1
          %s610 = scalar_lea.sflag [#allocation5], %s609
          %s611 = sand.u32 %s120, 1
          %s612 = smul.addr %s611, 8
          %s613 = scalar_lea.vmem [#allocation9], %s612
          %614 = dma.done %s610, 128
        $region64: #{shared_qwen2_moe_mlp.1} parent=59 // pred_fallthru
          _
      $region60: #{shared_qwen2_moe_mlp.1} parent=5 // pred_fallthru
        _
    $region6: #{shared_qwen2_moe_mlp.1} parent=1 // loop_footer
      %s20 = sadd.s32 1, %s16
    $region7: #{shared_qwen2_moe_mlp.1} parent=1 // loop_footer_branch
      %15 = sbr.rel target = $region3
    $region8: #{shared_qwen2_moe_mlp.1} parent=1 // loop_exit
      _
    %615 = vsyncpa [#allocation4], 1
    %s616 = scalar_lea.sflag [#allocation4], 1
    %617 = vsyncpa %s616, 1
    %618 = vsyncpa [#allocation7], 1
    %619 = vsyncpa [#allocation5], 1
    %s620 = scalar_lea.sflag [#allocation5], 1
    %621 = vsyncpa %s620, 1

</llo_original>
